<compile_context>
chip_gen: v7x
topology: tpu7x:2x2x1
jax: 0.10.0
libtpu: 0.0.40
codegen_flags: <defaults>
</compile_context>

<pallas_src>
import jax
import jax.numpy as jnp
from jax.experimental import pallas as pl
from jax.experimental.pallas import tpu as pltpu


# ---------------------------------------------------------------------------
# Parameter initialization (deterministic; mirrors ConvNet.__init__ shapes).
# Unused in forward, but constructed to match the module faithfully.
# ---------------------------------------------------------------------------
def init_convnet_params(key):
    k_w, k_b, k_pin, k_p = jax.random.split(key, 4)
    return {
        # ConvX == Conv1d(in_channels=1, out_channels=3, kernel_size=4)
        "conv1.weight": jax.random.uniform(k_w, (3, 1, 4), dtype=jnp.float32),
        "conv1.bias": jax.random.uniform(k_b, (3,), dtype=jnp.float32),
        "conv1.param_in": jax.random.uniform(k_pin, (5,), dtype=jnp.float32),
        "param": jax.random.uniform(k_p, (5,), dtype=jnp.float32),
    }


# ---------------------------------------------------------------------------
# Pallas kernel: identity forward (out = x).
# ---------------------------------------------------------------------------
def _copy_kernel(x_ref, o_ref):
    o_ref[...] = x_ref[...]


_LANES = 1024                   # 8 * 128: long contiguous rows per DMA descriptor
_TILE_BYTES = 2 * 1024 * 1024   # 2 MiB per operand tile (v5e-safe, amortizes step cost)
_SMALL_BYTES = _TILE_BYTES      # <= one tile -> whole-array single-block fast path


def _sublane_multiple(dtype):
    # f32 -> 8, bf16/f16 -> 16, int8/fp8 -> 32 sublane packing.
    return {4: 8, 2: 16, 1: 32}.get(jnp.dtype(dtype).itemsize, 8)


def _whole_array_copy(x):
    # Single whole-array block: full dims are exempt from the (8,128) rule.
    return pl.pallas_call(
        _copy_kernel,
        out_shape=jax.ShapeDtypeStruct(x.shape, x.dtype),
    )(x)


def _tiled_copy_2d(slab, block_rows):
    rows, lanes = slab.shape
    return pl.pallas_call(
        _copy_kernel,
        out_shape=jax.ShapeDtypeStruct(slab.shape, slab.dtype),
        grid=(pl.cdiv(rows, block_rows),),
        in_specs=[pl.BlockSpec((block_rows, lanes), lambda i: (i, 0))],
        out_specs=pl.BlockSpec((block_rows, lanes), lambda i: (i, 0)),
        compiler_params=pltpu.CompilerParams(
            dimension_semantics=("parallel",)),
    )(slab)


@jax.jit
def convnet_forward(x):
    """ConvNet.forward: returns x unchanged (conv1 / param are unused by the module)."""
    orig_shape = x.shape
    n = x.size
    if n == 0:
        return x
    if x.ndim == 0:
        return _whole_array_copy(x.reshape(1, 1)).reshape(orig_shape)

    itemsize = jnp.dtype(x.dtype).itemsize

    # ---- tiny-input fast path: one whole-array block, no plumbing ----------
    if n * itemsize <= _SMALL_BYTES:
        return _whole_array_copy(x)

    sub = _sublane_multiple(x.dtype)
    block_rows = max(sub, (_TILE_BYTES // (_LANES * itemsize)) // sub * sub)

    # ---- lane-aligned: direct reshape, no pad / slice round trips ----------
    if n % _LANES == 0:
        slab = x.reshape(n // _LANES, _LANES)
        return _tiled_copy_2d(slab, block_rows).reshape(orig_shape)

    # ---- large + ragged: pad only up to the next lane row ------------------
    # TODO(synk): this rare path still pays one pad + one slice pass over HBM.
    rows = pl.cdiv(n, _LANES)
    flat = jnp.pad(x.reshape(-1), (0, rows * _LANES - n))
    out = _tiled_copy_2d(flat.reshape(rows, _LANES), block_rows)
    return out.reshape(-1)[:n].reshape(orig_shape)


if __name__ == "__main__":
    key = jax.random.PRNGKey(0)
    k_params, k_x = jax.random.split(key)

    # Parameters exist for fidelity with the module definition; forward ignores them.
    params = init_convnet_params(k_params)

    # Small input consistent with a Conv1d(1, 3, 4) module:
    # (batch=2, channels=1, length=16)
    x = jax.random.normal(k_x, (2, 1, 16), dtype=jnp.float32)

    y = jax.block_until_ready(convnet_forward(x))

    assert y.shape == x.shape and y.dtype == x.dtype
    assert bool(jnp.all(y == x))
    print("KERNEL_OK")
</pallas_src>

<mosaic_0001>
module attributes {stable_mosaic.version = 11 : i64} {
  func.func @_copy_kernel(%arg0: memref<2x1x16xf32, #tpu.memory_space<vmem>>, %arg1: memref<2x1x16xf32, #tpu.memory_space<vmem>>) attributes {dimension_semantics = [], scalar_prefetch = 0 : i64, scratch_operands = 0 : i64, tpu.core_type = #tpu.core_type<tc>} {
    %c0 = arith.constant 0 : index
    %c0_0 = arith.constant 0 : index
    %c0_1 = arith.constant 0 : index
    %0 = vector.load %arg0[%c0, %c0_0, %c0_1] : memref<2x1x16xf32, #tpu.memory_space<vmem>>, vector<2x1x16xf32>
    %c0_2 = arith.constant 0 : index
    %c0_3 = arith.constant 0 : index
    %c0_4 = arith.constant 0 : index
    %1 = vector.load %arg1[%c0_2, %c0_3, %c0_4] : memref<2x1x16xf32, #tpu.memory_space<vmem>>, vector<2x1x16xf32>
    tpu.vector_store %arg1[%c0_2, %c0_3, %c0_4], %0 {strides = array<i32>} : memref<2x1x16xf32, #tpu.memory_space<vmem>>, vector<2x1x16xf32>,
    return
  }
}

</mosaic_0001>

<llo_original>
// kernel: convnet_forward.1
$region0: #{convnet_forward.1}
  #allocation0 [shape = 'u32[]', space=smem, size = 0x4, offset = 0x4, fixed_abs, tag = 'smem constant byte address 0x4 - core index']
  #allocation1 [shape = 'u32[144,128]{1,0:T(1,128)}', space=vmem, size = 0x12000, scoped, tag = 'internal scratch']
  %s0 = inlined_call_operand.hbm [shape: f32[2,1,16], index: 0, kind: input, shape index: {}]
  %s1 = inlined_call_operand.hbm [shape: f32[2,1,16], index: 1, kind: output, shape index: {}]
  %s2 = sld [smem:[#allocation0]]
  $region18: #{convnet_forward.1} parent=0
    _
  %s4 = ssub.s32 1, %s2
  %s5 = scalar_select 0, %s4, %s2
  $region1: #{convnet_forward.1} parent=0
    #allocation2 [shape = 'u8[1024]{0}', space=vmem, size = 0x400, scoped, tag = 'input window, operand 0, single buffered']
    #allocation3 [shape = 's32[1]{0}', space=sflag, size = 0x4, scoped, tag = 'scoped memory for convnet_forward.1']
    #allocation4 [shape = 's32[1]{0}', space=sflag, size = 0x4, scoped, tag = 'scoped memory for convnet_forward.1']
    #allocation5 [shape = 'u8[1024]{0}', space=vmem, size = 0x400, scoped, tag = 'output window, operand 0, single buffered']
    %6 = vsyncpa [#allocation3], 0
    %7 = vsyncpa [#allocation4], 0
    // Predicated region
    $region2: #{convnet_forward.1} parent=1 // pred_check
      _
    $region3: #{convnet_forward.1} parent=1 // pred_check_branch
      %9 = sbr.rel (0) target = $region5
    $region4: #{convnet_forward.1} parent=1 // pred_region
      %s11 = ssub.s32 32, 32
      %12 = vsyncadd [#allocation3], %s11
      %s13 = sshll.u32 [#allocation2], 4
      %s14 = int_to_ptr.vmem [resolvable:$true] %s13
      %19 = dma.hbm_to_vmem [thread:$0]  %s0, 32, %s14, [#allocation3], 16, 16, 1
    $region5: #{convnet_forward.1} parent=1 // pred_fallthru
      _
    // Predicated region
    $region6: #{convnet_forward.1} parent=1 // pred_check
      _
    $region7: #{convnet_forward.1} parent=1 // pred_check_branch
      %21 = sbr.rel (0) target = $region9
    $region8: #{convnet_forward.1} parent=1 // pred_region
      %22 = dma.done [#allocation3], 32
    $region9: #{convnet_forward.1} parent=1 // pred_fallthru
      _
    %v23 = vld [vmem:[#allocation2] sm:$0x1]
    %v24 = vld [vmem:[#allocation2 + $0x1] sm:$0x1]
    %vm25 = vcmask 122880
    %26 = vst.msk [vmem:[#allocation5] sm:$0x1] %vm25, %v23
    %27 = vst.msk [vmem:[#allocation5 + $0x1] sm:$0x1] %vm25, %v24
    // Predicated region
    $region10: #{convnet_forward.1} parent=1 // pred_check
      _
    $region11: #{convnet_forward.1} parent=1 // pred_check_branch
      %29 = sbr.rel (0) target = $region13
    $region12: #{convnet_forward.1} parent=1 // pred_region
      %s31 = ssub.s32 32, 32
      %32 = vsyncadd [#allocation4], %s31
      %s33 = sshll.u32 [#allocation5], 4
      %s34 = int_to_ptr.vmem [resolvable:$true] %s33
      %39 = dma.vmem_to_hbm [thread:$0]  %s34, 32, %s1, [#allocation4], 16, 16, 1
    $region13: #{convnet_forward.1} parent=1 // pred_fallthru
      _
    // Predicated region
    $region14: #{convnet_forward.1} parent=1 // pred_check
      _
    $region15: #{convnet_forward.1} parent=1 // pred_check_branch
      %41 = sbr.rel (0) target = $region17
    $region16: #{convnet_forward.1} parent=1 // pred_region
      %42 = dma.done [#allocation4], 32
    $region17: #{convnet_forward.1} parent=1 // pred_fallthru
      _
    %43 = vsyncpa [#allocation3], 1
    %44 = vsyncpa [#allocation4], 1

</llo_original>
